<compile_context>
chip_gen: v6e
topology: v6e:2x2x1
jax: 0.10.0
libtpu: 0.0.40
codegen_flags: <defaults>
</compile_context>

<pallas_src>
import jax
import jax.numpy as jnp
from jax.experimental import pallas as pl
from jax.experimental.pallas import tpu as pltpu

LAMADA = 0.001
LEAKY_SLOPE = 0.1      # nn.LeakyReLU(0.1) in the module


def _round_up(x, m):
    return (x + m - 1) // m * m


def _leaky_relu(x):
    return jnp.where(x >= 0, x, LEAKY_SLOPE * x)


def _num_tensorcores():
    """TensorCores reachable from one Pallas program via a 'parallel' axis.

    v2/v3/v5e/v6e expose 1 TC per JAX device; v4/v5p (megacore) and v7x expose
    2.  Detection is conservative: unknown strings fall back to 1 (correct,
    just no core sharding)."""
    try:
        kind = jax.devices()[0].device_kind.lower()
    except Exception:
        return 1
    return 2 if any(tag in kind for tag in ("v4", "v5p", "v7")) else 1


def _rowsum_lane_dense(x):
    """Row-sum of [R, F] returned as a lane-dense [1, R] row.

    Implemented as ones @ x^T on the MXU: the matmul performs both the
    F-reduction and the sublane->lane relayout, so the per-row scalars come
    out lane-dense and can be subtracted directly from the (1, R) ratings row
    (no narrow-column arithmetic, no XLU reshape)."""
    ones = jnp.ones((8, x.shape[-1]), x.dtype)          # 8 sublanes: safe M
    s = jax.lax.dot_general(ones, x, (((1,), (1,)), ((), ())),
                            preferred_element_type=jnp.float32)   # (8, R)
    return s[0:1, :]                                      # rows identical


# ----------------------------- kernels ---------------------------------------

def _make_forward_kernel():
    """No-filter path: sse = sum((u.it - r)^2), ssq = sum(u^2)+sum(it^2)."""
    def kernel(u_ref, it_ref, r_ref, sse_ref, ssq_ref):
        @pl.when(pl.program_id(1) == 0)
        def _init():
            sse_ref[...] = jnp.zeros_like(sse_ref)
            ssq_ref[...] = jnp.zeros_like(ssq_ref)

        u = u_ref[...].astype(jnp.float32)
        it = it_ref[...].astype(jnp.float32)
        prod = u * it                                     # [TB, F] f32

        pred = _rowsum_lane_dense(prod)                   # [1, TB] lane-dense
        diff = pred - r_ref[...]                          # ratings row [1, TB]
        # No mask: zero-padded rows give pred=0, r=0, u=it=0 -> contribute 0.

        sse_ref[...] += jnp.sum(diff * diff, axis=(0, 1), keepdims=True)
        ssq_ref[...] += (jnp.sum(u * u, axis=(0, 1), keepdims=True) +
                         jnp.sum(it * it, axis=(0, 1), keepdims=True))
    return kernel


def _make_predict_kernel(tb, b_true, n_per_core, need_mask):
    """Filter path: both embeddings through the user_filter MLP, sse only."""
    def kernel(u_ref, it_ref, r_ref, w1_ref, b1_ref, w2_ref, b2_ref,
               sse_ref, x_buf):
        c = pl.program_id(0)
        i = pl.program_id(1)

        @pl.when(i == 0)
        def _init():
            sse_ref[...] = jnp.zeros_like(sse_ref)

        # Fused MLP: stage u and it into one [2*TB, F] buffer so each Linear
        # is issued once (one RHS weight push / result drain for both).
        x_buf[pl.ds(0, tb), :] = u_ref[...]
        x_buf[pl.ds(tb, tb), :] = it_ref[...]
        x = x_buf[...]

        h = jnp.dot(x, w1_ref[...], preferred_element_type=jnp.float32)
        h = _leaky_relu(h + b1_ref[...].astype(jnp.float32))
        y = jnp.dot(h.astype(w2_ref.dtype), w2_ref[...],
                    preferred_element_type=jnp.float32)
        y = _leaky_relu(y + b2_ref[...].astype(jnp.float32))

        uf = y[0:tb]                                      # filtered user rows
        itf = y[tb:2 * tb]                                # filtered item rows

        pred = _rowsum_lane_dense(uf * itf)               # [1, TB]
        diff = pred - r_ref[...]

        if need_mask:
            # MLP biases make padded rows nonzero -> mask only their diff.
            row0 = (c * n_per_core + i) * tb
            rows = row0 + jax.lax.broadcasted_iota(jnp.int32, (1, tb), 1)
            diff = jnp.where(rows < b_true, diff, 0.0)

        sse_ref[...] += jnp.sum(diff * diff, axis=(0, 1), keepdims=True)
        # ssq intentionally not computed: predict() never uses it.
    return kernel


# ----------------------------- wrapper ----------------------------------------

def _bpr_sums(params, user_emb, item_emb, ratings, *, apply_filter,
              use_bf16=True):
    """Fused loss-sum kernel.  Returns (sum_sq_err, sum_sq_emb_or_None, B, F)."""
    b_true, f = user_emb.shape
    emb_dtype = jnp.bfloat16 if use_bf16 else jnp.float32
    esize = jnp.dtype(emb_dtype).itemsize
    num_cores = _num_tensorcores()

    # Adaptive batch tile: multiple of 128 (keeps every block (8,128)-aligned
    # and the ratings row block lane-exact), bounded by a byte budget so large
    # batches amortize per-step overhead, and by cdiv(B, cores) so small
    # batches don't over-pad.  The filter path gets a smaller budget because
    # of its [2*TB, 2F] f32 hidden activation.
    budget = (1 if apply_filter else 2) * 1024 * 1024     # bytes / embedding tile
    tb_cap = max(128, budget // (f * esize))
    tb_need = -(-b_true // num_cores)
    tb = min(_round_up(min(tb_cap, tb_need), 128), 8192)

    b_pad = _round_up(b_true, num_cores * tb)
    n_per_core = b_pad // (num_cores * tb)
    pad = b_pad - b_true

    u = user_emb.astype(emb_dtype)
    it = item_emb.astype(emb_dtype)
    # Ratings as a single lane-dense f32 row: no 128x column padding in
    # HBM/VMEM, dense DMA, ~6 KB per 1K rows instead of ~512 KB effective.
    r = ratings.astype(jnp.float32).reshape(1, -1)
    if pad:
        u = jnp.pad(u, ((0, pad), (0, 0)))
        it = jnp.pad(it, ((0, pad), (0, 0)))
        r = jnp.pad(r, ((0, 0), (0, pad)))

    row_map = lambda c, i: (c * n_per_core + i, 0)
    rat_map = lambda c, i: (0, c * n_per_core + i)
    out_map = lambda c, i: (c, 0, 0)

    in_specs = [pl.BlockSpec((tb, f), row_map),
                pl.BlockSpec((tb, f), row_map),
                pl.BlockSpec((1, tb), rat_map)]
    args = [u, it, r]

    if apply_filter:
        w1 = params["w1"].astype(emb_dtype)
        w2 = params["w2"].astype(emb_dtype)
        b1 = params["b1"].astype(jnp.float32)
        b2 = params["b2"].astype(jnp.float32)
        const_map = lambda c, i: (0, 0)
        # Constant index_map -> weights DMA'd once and kept VMEM-resident.
        in_specs += [pl.BlockSpec(w1.shape, const_map),
                     pl.BlockSpec(b1.shape, const_map),
                     pl.BlockSpec(w2.shape, const_map),
                     pl.BlockSpec(b2.shape, const_map)]
        args += [w1, b1, w2, b2]
        kernel = _make_predict_kernel(tb, b_true, n_per_core, pad != 0)
        out_shape = jax.ShapeDtypeStruct((num_cores, 1, 1), jnp.float32)
        out_specs = pl.BlockSpec((None, 1, 1), out_map)
        scratch_shapes = [pltpu.VMEM((2 * tb, f), emb_dtype)]
    else:
        kernel = _make_forward_kernel()
        out_shape = (jax.ShapeDtypeStruct((num_cores, 1, 1), jnp.float32),
                     jax.ShapeDtypeStruct((num_cores, 1, 1), jnp.float32))
        out_specs = (pl.BlockSpec((None, 1, 1), out_map),
                     pl.BlockSpec((None, 1, 1), out_map))
        scratch_shapes = []

    res = pl.pallas_call(
        kernel,
        grid=(num_cores, n_per_core),
        in_specs=in_specs,
        out_specs=out_specs,
        out_shape=out_shape,
        scratch_shapes=scratch_shapes,
        compiler_params=pltpu.CompilerParams(
            # Leading axis shards across TensorCores where the chip has >1
            # (v4/v5p, v7x); the batch axis is an "arbitrary" reduction since
            # the (1,1) output block stays resident across it.
            # TODO(synk): if an xprof trace on v7x shows only one TC busy,
            # switch the leading axis to pltpu.CORE_PARALLEL.
            dimension_semantics=("parallel", "arbitrary"),
            vmem_limit_bytes=48 * 1024 * 1024),
    )(*args)

    if apply_filter:
        return jnp.sum(res), None, b_true, f
    sse, ssq = res
    return jnp.sum(sse), jnp.sum(ssq), b_true, f


def bpr_forward(params, user0, item_i0, ratings, *, use_bf16=True):
    """BPR_user_filter.forward with Discrminator=None, return_batch_embedding=False."""
    # Embedding gathers stay in XLA; tables are stored bf16 so the gather moves
    # half the bytes.  (In-kernel gather only pays off with manual row DMAs.)
    user_emb = params["embed_user"][user0]
    item_emb = params["embed_item"][item_i0]
    sse, ssq, b, f = _bpr_sums(params, user_emb, item_emb, ratings,
                               apply_filter=False, use_bf16=use_bf16)
    loss2 = sse / b
    l2_regulization = LAMADA * ssq / (b * f)
    loss = loss2 + l2_regulization
    # TODO(synk): Discrminator(user, user0, True) is an external module passed
    # at call time; the -10*l_penalty_1 term only exists in that branch.  Here
    # it is 0, exactly matching the Discrminator=None path of the original.
    l_penalty_1 = jnp.asarray(0.0, jnp.float32)
    return loss, loss2, l_penalty_1, l2_regulization


def bpr_predict(params, user0, item_i0, ratings, *, use_bf16=True):
    """BPR_user_filter.predict (return_e=False): MSE of user_filter'ed embeddings."""
    user_emb = params["embed_user"][user0]
    item_emb = params["embed_item"][item_i0]
    sse, _, b, _ = _bpr_sums(params, user_emb, item_emb, ratings,
                             apply_filter=True, use_bf16=use_bf16)
    return sse / b


def make_params(key, user_num, item_num, factor_num, emb_dtype=jnp.bfloat16):
    """Deterministic init mirroring the module's __init__ (tables stored bf16)."""
    ks = jax.random.split(key, 6)
    f = factor_num
    embed_user = (0.01 * jax.random.normal(ks[0], (user_num, f),
                                           jnp.float32)).astype(emb_dtype)
    embed_item = (0.01 * jax.random.normal(ks[1], (item_num, f),
                                           jnp.float32)).astype(emb_dtype)
    # user_filter Linears: PyTorch-default uniform(-1/sqrt(fan_in), 1/sqrt(fan_in)),
    # stored pre-transposed as [in, out] so the kernel computes x @ W + b.
    # NOTE: for best MXU/lane utilization factor_num should be a multiple of
    # 128 in real configs; kept small here for the smoke test (block == full
    # dim keeps it legal).
    lim1 = 1.0 / float(f) ** 0.5
    w1 = jax.random.uniform(ks[2], (f, 2 * f), jnp.float32, -lim1, lim1)
    b1 = jax.random.uniform(ks[3], (1, 2 * f), jnp.float32, -lim1, lim1)
    lim2 = 1.0 / float(2 * f) ** 0.5
    w2 = jax.random.uniform(ks[4], (2 * f, f), jnp.float32, -lim2, lim2)
    b2 = jax.random.uniform(ks[5], (1, f), jnp.float32, -lim2, lim2)
    return {"embed_user": embed_user, "embed_item": embed_item,
            "w1": w1, "b1": b1, "w2": w2, "b2": b2}


# ------------------------- pure-JAX references -------------------------------

def _ref_forward(user_emb, item_emb, ratings):
    pred = jnp.sum(user_emb * item_emb, axis=-1)
    r = ratings.astype(jnp.float32)
    loss2 = jnp.mean((pred - r) ** 2)
    l2 = LAMADA * jnp.mean(user_emb ** 2) + LAMADA * jnp.mean(item_emb ** 2)
    return loss2 + l2, loss2, l2


def _ref_predict(params, user0, item_i0, ratings):
    def mlp(x):
        h = x.astype(jnp.float32) @ params["w1"] + params["b1"]
        h = jnp.where(h >= 0, h, LEAKY_SLOPE * h)
        y = h @ params["w2"] + params["b2"]
        return jnp.where(y >= 0, y, LEAKY_SLOPE * y)
    u = mlp(params["embed_user"][user0])
    it = mlp(params["embed_item"][item_i0])
    pred = jnp.sum(u * it, axis=-1)
    return jnp.mean((pred - ratings.astype(jnp.float32)) ** 2)


if __name__ == "__main__":
    key = jax.random.PRNGKey(0)
    user_num, item_num, factor_num, batch = 16, 16, 32, 8

    pkey, ukey, ikey, rkey = jax.random.split(key, 4)
    params = make_params(pkey, user_num, item_num, factor_num)

    user0 = jax.random.randint(ukey, (batch,), 0, user_num, jnp.int32)
    item_i0 = jax.random.randint(ikey, (batch,), 0, item_num, jnp.int32)
    ratings = jax.random.randint(rkey, (batch,), 1, 6, jnp.int32)   # 1..5 stars

    # ---- forward (Discrminator=None path) ----
    loss, loss2, l_pen, l2_reg = bpr_forward(params, user0, item_i0, ratings)
    jax.block_until_ready((loss, loss2, l2_reg))

    # Exact reference on the same bf16-quantized embeddings the kernel consumes.
    uq = params["embed_user"][user0].astype(jnp.float32)
    iq = params["embed_item"][item_i0].astype(jnp.float32)
    ref_loss, ref_loss2, ref_l2 = _ref_forward(uq, iq, ratings)
    assert jnp.allclose(loss, ref_loss, rtol=1e-4, atol=1e-8), (loss, ref_loss)
    assert jnp.allclose(loss2, ref_loss2, rtol=1e-4, atol=1e-8), (loss2, ref_loss2)
    assert jnp.allclose(l2_reg, ref_l2, rtol=1e-4, atol=1e-10), (l2_reg, ref_l2)
    assert float(l_pen) == 0.0

    # ---- predict path (user_filter MLP runs inside the kernel on the MXU) ----
    rmse = bpr_predict(params, user0, item_i0, ratings)
    jax.block_until_ready(rmse)
    ref_rmse = _ref_predict(params, user0, item_i0, ratings)
    assert jnp.allclose(rmse, ref_rmse, rtol=5e-2, atol=1e-5), (rmse, ref_rmse)

    print("KERNEL_OK")
</pallas_src>

<mosaic_0001>
module attributes {stable_mosaic.version = 11 : i64} {
  func.func @kernel(%arg0: i32, %arg1: i32, %arg2: memref<128x32xbf16, #tpu.memory_space<vmem>>, %arg3: memref<128x32xbf16, #tpu.memory_space<vmem>>, %arg4: memref<1x128xf32, #tpu.memory_space<vmem>>, %arg5: memref<1x1x1xf32, #tpu.memory_space<vmem>>, %arg6: memref<1x1x1xf32, #tpu.memory_space<vmem>>) attributes {dimension_semantics = [#tpu.dimension_semantics<parallel>, #tpu.dimension_semantics<arbitrary>], iteration_bounds = array<i64: 1, 1>, scalar_prefetch = 0 : i64, scratch_operands = 0 : i64, tpu.core_type = #tpu.core_type<tc>, window_params = [{transform_indices = @transform_0, window_bounds = array<i64: 128, 32>}, {transform_indices = @transform_1, window_bounds = array<i64: 128, 32>}, {transform_indices = @transform_2, window_bounds = array<i64: 1, 128>}, {transform_indices = @transform_3, window_bounds = array<i64: 1, 1, 1>}, {transform_indices = @transform_4, window_bounds = array<i64: 1, 1, 1>}]} {
    %c0_i32 = arith.constant 0 : i32
    %0 = arith.cmpi eq, %arg1, %c0_i32 : i32
    %1 = arith.extui %0 : i1 to i32
    %c0_i32_0 = arith.constant 0 : i32
    %2 = arith.cmpi ne, %1, %c0_i32_0 : i32
    scf.if %2 {
      %cst_22 = arith.constant 0.000000e+00 : f32
      %44 = vector.broadcast %cst_22 : f32 to vector<1x1xf32>
      %c0_23 = arith.constant 0 : index
      %c0_24 = arith.constant 0 : index
      %c0_25 = arith.constant 0 : index
      %45 = vector.load %arg5[%c0_23, %c0_24, %c0_25] : memref<1x1x1xf32, #tpu.memory_space<vmem>>, vector<1x1x1xf32>
      %46 = vector.shape_cast %45 : vector<1x1x1xf32> to vector<1x1xf32>
      %47 = vector.shape_cast %44 : vector<1x1xf32> to vector<1x1x1xf32>
      tpu.vector_store %arg5[%c0_23, %c0_24, %c0_25], %47 {strides = array<i32>} : memref<1x1x1xf32, #tpu.memory_space<vmem>>, vector<1x1x1xf32>,
      %cst_26 = arith.constant 0.000000e+00 : f32
      %48 = vector.broadcast %cst_26 : f32 to vector<1x1xf32>
      %c0_27 = arith.constant 0 : index
      %c0_28 = arith.constant 0 : index
      %c0_29 = arith.constant 0 : index
      %49 = vector.load %arg6[%c0_27, %c0_28, %c0_29] : memref<1x1x1xf32, #tpu.memory_space<vmem>>, vector<1x1x1xf32>
      %50 = vector.shape_cast %49 : vector<1x1x1xf32> to vector<1x1xf32>
      %51 = vector.shape_cast %48 : vector<1x1xf32> to vector<1x1x1xf32>
      tpu.vector_store %arg6[%c0_27, %c0_28, %c0_29], %51 {strides = array<i32>} : memref<1x1x1xf32, #tpu.memory_space<vmem>>, vector<1x1x1xf32>,
    } else {
    }
    %c0 = arith.constant 0 : index
    %c0_1 = arith.constant 0 : index
    %3 = vector.load %arg2[%c0, %c0_1] : memref<128x32xbf16, #tpu.memory_space<vmem>>, vector<128x32xbf16>
    %4 = arith.extf %3 : vector<128x32xbf16> to vector<128x32xf32>
    %c0_2 = arith.constant 0 : index
    %c0_3 = arith.constant 0 : index
    %5 = vector.load %arg3[%c0_2, %c0_3] : memref<128x32xbf16, #tpu.memory_space<vmem>>, vector<128x32xbf16>
    %6 = arith.extf %5 : vector<128x32xbf16> to vector<128x32xf32>
    %7 = arith.mulf %4, %6 : vector<128x32xf32>
    %cst = arith.constant 1.000000e+00 : f32
    %8 = vector.broadcast %cst : f32 to vector<8x32xf32>
    %cst_4 = arith.constant dense<0.000000e+00> : vector<8x128xf32>
    %9 = tpu.matmul %8, %7, %cst_4 {dimension_numbers = #tpu.dot_dimension_numbers<[1], [1], [0], [0], [0, 0, 1, 0], [], []>} : vector<8x32xf32>, vector<128x32xf32>, vector<8x128xf32> -> vector<8x128xf32>
    %10 = vector.extract_strided_slice %9 {offsets = [0, 0], sizes = [1, 128], strides = [1, 1]} : vector<8x128xf32> to vector<1x128xf32>
    %c0_5 = arith.constant 0 : index
    %c0_6 = arith.constant 0 : index
    %11 = vector.load %arg4[%c0_5, %c0_6] : memref<1x128xf32, #tpu.memory_space<vmem>>, vector<1x128xf32>
    %12 = arith.subf %10, %11 : vector<1x128xf32>
    %c0_7 = arith.constant 0 : index
    %c0_8 = arith.constant 0 : index
    %c0_9 = arith.constant 0 : index
    %13 = vector.load %arg5[%c0_7, %c0_8, %c0_9] : memref<1x1x1xf32, #tpu.memory_space<vmem>>, vector<1x1x1xf32>
    %14 = vector.shape_cast %13 : vector<1x1x1xf32> to vector<1x1xf32>
    %15 = arith.mulf %12, %12 : vector<1x128xf32>
    %16 = vector.shape_cast %15 : vector<1x128xf32> to vector<1x1x128xf32>
    %cst_10 = arith.constant dense<0.000000e+00> : vector<1xf32>
    %17 = vector.multi_reduction <add>, %16, %cst_10 [1, 2] : vector<1x1x128xf32> to vector<1xf32>
    %18 = vector.shape_cast %17 : vector<1xf32> to vector<1x1x1xf32>
    %19 = vector.extract %18[0, 0, 0] : f32 from vector<1x1x1xf32>
    %20 = vector.broadcast %19 : f32 to vector<1x1xf32>
    %21 = arith.addf %14, %20 : vector<1x1xf32>
    %c0_11 = arith.constant 0 : index
    %c0_12 = arith.constant 0 : index
    %c0_13 = arith.constant 0 : index
    %22 = vector.load %arg5[%c0_11, %c0_12, %c0_13] : memref<1x1x1xf32, #tpu.memory_space<vmem>>, vector<1x1x1xf32>
    %23 = vector.shape_cast %22 : vector<1x1x1xf32> to vector<1x1xf32>
    %24 = vector.shape_cast %21 : vector<1x1xf32> to vector<1x1x1xf32>
    tpu.vector_store %arg5[%c0_11, %c0_12, %c0_13], %24 {strides = array<i32>} : memref<1x1x1xf32, #tpu.memory_space<vmem>>, vector<1x1x1xf32>,
    %c0_14 = arith.constant 0 : index
    %c0_15 = arith.constant 0 : index
    %c0_16 = arith.constant 0 : index
    %25 = vector.load %arg6[%c0_14, %c0_15, %c0_16] : memref<1x1x1xf32, #tpu.memory_space<vmem>>, vector<1x1x1xf32>
    %26 = vector.shape_cast %25 : vector<1x1x1xf32> to vector<1x1xf32>
    %27 = arith.mulf %4, %4 : vector<128x32xf32>
    %28 = vector.shape_cast %27 : vector<128x32xf32> to vector<1x128x32xf32>
    %cst_17 = arith.constant dense<0.000000e+00> : vector<1xf32>
    %29 = vector.multi_reduction <add>, %28, %cst_17 [1, 2] : vector<1x128x32xf32> to vector<1xf32>
    %30 = vector.shape_cast %29 : vector<1xf32> to vector<1x1x1xf32>
    %31 = vector.extract %30[0, 0, 0] : f32 from vector<1x1x1xf32>
    %32 = vector.broadcast %31 : f32 to vector<1x1xf32>
    %33 = arith.mulf %6, %6 : vector<128x32xf32>
    %34 = vector.shape_cast %33 : vector<128x32xf32> to vector<1x128x32xf32>
    %cst_18 = arith.constant dense<0.000000e+00> : vector<1xf32>
    %35 = vector.multi_reduction <add>, %34, %cst_18 [1, 2] : vector<1x128x32xf32> to vector<1xf32>
    %36 = vector.shape_cast %35 : vector<1xf32> to vector<1x1x1xf32>
    %37 = vector.extract %36[0, 0, 0] : f32 from vector<1x1x1xf32>
    %38 = vector.broadcast %37 : f32 to vector<1x1xf32>
    %39 = arith.addf %32, %38 : vector<1x1xf32>
    %40 = arith.addf %26, %39 : vector<1x1xf32>
    %c0_19 = arith.constant 0 : index
    %c0_20 = arith.constant 0 : index
    %c0_21 = arith.constant 0 : index
    %41 = vector.load %arg6[%c0_19, %c0_20, %c0_21] : memref<1x1x1xf32, #tpu.memory_space<vmem>>, vector<1x1x1xf32>
    %42 = vector.shape_cast %41 : vector<1x1x1xf32> to vector<1x1xf32>
    %43 = vector.shape_cast %40 : vector<1x1xf32> to vector<1x1x1xf32>
    tpu.vector_store %arg6[%c0_19, %c0_20, %c0_21], %43 {strides = array<i32>} : memref<1x1x1xf32, #tpu.memory_space<vmem>>, vector<1x1x1xf32>,
    return
  }
  func.func @transform_0(%arg0: i32, %arg1: i32) -> (i32, i32) {
    %c1_i32 = arith.constant 1 : i32
    %0 = arith.muli %arg0, %c1_i32 : i32
    %1 = arith.addi %0, %arg1 : i32
    %c0_i32 = arith.constant 0 : i32
    %c0_i32_0 = arith.constant 0 : i32
    return %1, %c0_i32 : i32, i32
  }
  func.func @transform_1(%arg0: i32, %arg1: i32) -> (i32, i32) {
    %c1_i32 = arith.constant 1 : i32
    %0 = arith.muli %arg0, %c1_i32 : i32
    %1 = arith.addi %0, %arg1 : i32
    %c0_i32 = arith.constant 0 : i32
    %c0_i32_0 = arith.constant 0 : i32
    return %1, %c0_i32 : i32, i32
  }
  func.func @transform_2(%arg0: i32, %arg1: i32) -> (i32, i32) {
    %c1_i32 = arith.constant 1 : i32
    %0 = arith.muli %arg0, %c1_i32 : i32
    %1 = arith.addi %0, %arg1 : i32
    %c0_i32 = arith.constant 0 : i32
    %c0_i32_0 = arith.constant 0 : i32
    return %c0_i32, %1 : i32, i32
  }
  func.func @transform_3(%arg0: i32, %arg1: i32) -> (i32, i32, i32) {
    %c0_i32 = arith.constant 0 : i32
    %c0_i32_0 = arith.constant 0 : i32
    %c0_i32_1 = arith.constant 0 : i32
    return %arg0, %c0_i32, %c0_i32_0 : i32, i32, i32
  }
  func.func @transform_4(%arg0: i32, %arg1: i32) -> (i32, i32, i32) {
    %c0_i32 = arith.constant 0 : i32
    %c0_i32_0 = arith.constant 0 : i32
    %c0_i32_1 = arith.constant 0 : i32
    return %arg0, %c0_i32, %c0_i32_0 : i32, i32, i32
  }
}

</mosaic_0001>

<llo_original>
// kernel: tpu_custom_call.1
$region0: #{tpu_custom_call.1}
  #allocation0 [shape = 'u32[]', space=smem, size = 0x4, offset = 0x4, fixed_abs, tag = 'smem constant byte address 0x4 - core index']
  #allocation1 [shape = 'u32[144,128]{1,0:T(1,128)}', space=vmem, size = 0x12000, scoped, tag = 'internal scratch']
  %s0 = inlined_call_operand.vmem [shape: bf16[128,32], index: 0, kind: input, shape index: {}]
  %s1 = inlined_call_operand.vmem [shape: bf16[128,32], index: 1, kind: input, shape index: {}]
  %s2 = inlined_call_operand.vmem [shape: f32[1,128], index: 2, kind: input, shape index: {}]
  %s3 = inlined_call_operand.hbm [shape: f32[1,1,1], index: 3, kind: output, shape index: {0}]
  %s4 = inlined_call_operand.hbm [shape: f32[1,1,1], index: 4, kind: output, shape index: {1}]
  %5 = xla_tuple %s3, %s4
  %s6 = sld [smem:[#allocation0]]
  $region34: #{tpu_custom_call.1} parent=0
    _
  %s8 = ssub.s32 1, %s6
  %s9 = scalar_select 0, %s8, %s6
  $region1: #{tpu_custom_call.1} parent=0
    #allocation2 [shape = 'u8[512]{0}', space=vmem, size = 0x400, scoped, tag = 'output window, operand 0, single buffered']
    #allocation3 [shape = 's32[1]{0}', space=sflag, size = 0x4, scoped, tag = 'scoped memory for tpu_custom_call.1']
    #allocation4 [shape = 'u8[512]{0}', space=vmem, size = 0x400, scoped, tag = 'output window, operand 1, single buffered']
    #allocation5 [shape = 's32[1]{0}', space=sflag, size = 0x4, scoped, tag = 'scoped memory for tpu_custom_call.1']
    %10 = vsyncpa [#allocation3], 0
    %11 = vsyncpa [#allocation5], 0
    // Predicated region
    $region2: #{tpu_custom_call.1} parent=1 // pred_check
      _
    $region3: #{tpu_custom_call.1} parent=1 // pred_check_branch
      %13 = sbr.rel (0) target = $region5
    $region4: #{tpu_custom_call.1} parent=1 // pred_region
      %s14 = sadd.s32 0, 0
      %s15 = smul.u32 16, %s14
      %p16 = scmp.lt.s32.totalorder %s15, 15
      %s17 = scalar_select %p16, %s15, 15
      %s18 = smul.addr %s17, 4
      %s19 = scalar_lea.vmem %s0, %s18
      %s20 = sadd.s32 0, 0
      %s21 = smul.u32 16, %s20
    $region5: #{tpu_custom_call.1} parent=1 // pred_fallthru
      _
    // Predicated region
    $region6: #{tpu_custom_call.1} parent=1 // pred_check
      _
    $region7: #{tpu_custom_call.1} parent=1 // pred_check_branch
      %23 = sbr.rel (0) target = $region9
    $region8: #{tpu_custom_call.1} parent=1 // pred_region
      %s24 = sadd.s32 0, 0
      %s25 = smul.u32 16, %s24
      %p26 = scmp.lt.s32.totalorder %s25, 15
      %s27 = scalar_select %p26, %s25, 15
      %s28 = smul.addr %s27, 4
      %s29 = scalar_lea.vmem %s1, %s28
      %s30 = sadd.s32 0, 0
      %s31 = smul.u32 16, %s30
    $region9: #{tpu_custom_call.1} parent=1 // pred_fallthru
      _
    // Predicated region
    $region10: #{tpu_custom_call.1} parent=1 // pred_check
      _
    $region11: #{tpu_custom_call.1} parent=1 // pred_check_branch
      %33 = sbr.rel (0) target = $region13
    $region12: #{tpu_custom_call.1} parent=1 // pred_region
      %s34 = sadd.s32 0, 0
      %p35 = scmp.lt.s32.totalorder %s34, 0
      %s36 = scalar_select %p35, %s34, 0
      %s37 = scalar_lea.vmem %s2, %s36
      %s38 = sadd.s32 0, 0
    $region13: #{tpu_custom_call.1} parent=1 // pred_fallthru
      _
    %s39 = sadd.s32 0, 0
    %s40 = smul.u32 16, %s39
    %p41 = scmp.lt.s32.totalorder %s40, 15
    %s42 = scalar_select %p41, %s40, 15
    %s43 = smul.addr %s42, 4
    %s44 = scalar_lea.vmem %s0, %s43
    %s45 = sadd.s32 0, 0
    %s46 = smul.u32 16, %s45
    %p47 = scmp.lt.s32.totalorder %s46, 15
    %s48 = scalar_select %p47, %s46, 15
    %s49 = smul.addr %s48, 4
    %s50 = scalar_lea.vmem %s1, %s49
    %s51 = sadd.s32 0, 0
    %p52 = scmp.lt.s32.totalorder %s51, 0
    %s53 = scalar_select %p52, %s51, 0
    %s54 = scalar_lea.vmem %s2, %s53
    %s55 = sadd.s32 0, 0
    %s56 = smul.u32 16, %s55
    %p57 = scmp.lt.s32.totalorder %s56, 15
    %s58 = scalar_select %p57, %s56, 15
    %s59 = smul.addr %s58, 4
    %s60 = scalar_lea.vmem %s0, %s59
    %s61 = sadd.s32 0, 0
    %s62 = smul.u32 16, %s61
    %s63 = sadd.s32 0, 0
    %s64 = smul.u32 16, %s63
    %p65 = scmp.lt.s32.totalorder %s64, 15
    %s66 = scalar_select %p65, %s64, 15
    %s67 = smul.addr %s66, 4
    %s68 = scalar_lea.vmem %s1, %s67
    %s69 = sadd.s32 0, 0
    %s70 = smul.u32 16, %s69
    %s71 = sadd.s32 0, 0
    %p72 = scmp.lt.s32.totalorder %s71, 0
    %s73 = scalar_select %p72, %s71, 0
    %s74 = scalar_lea.vmem %s2, %s73
    %s75 = sadd.s32 0, 0
    %p76 = scmp.eq.s32.totalorder 0, 0
    // Predicated region
    $region14: #{tpu_custom_call.1} parent=1 // pred_check
      %p77 = pneg %p76
    $region15: #{tpu_custom_call.1} parent=1 // pred_check_branch
      %79 = sbr.rel (%p77) target = $region17
    $region16: #{tpu_custom_call.1} parent=1 // pred_region
      %vm80 = vcmask 0
      %81 = vst.msk [vmem:[#allocation2] sm:$0x1] %vm80, 0.0
      %82 = vst.msk [vmem:[#allocation4] sm:$0x1] %vm80, 0.0
    $region17: #{tpu_custom_call.1} parent=1 // pred_fallthru
      _
    %v83 = vld [vmem:[%s60] sm:$0xf]
    %v84 = vld [vmem:[%s60 + $0x4] sm:$0xf]
    %v85 = vld [vmem:[%s60 + $0x8] sm:$0xf]
    %v86 = vld [vmem:[%s60 + $0xc] sm:$0xf]
    %v87 = vld [vmem:[%s60 + $0x10] sm:$0xf]
    %v88 = vld [vmem:[%s60 + $0x14] sm:$0xf]
    %v89 = vld [vmem:[%s60 + $0x18] sm:$0xf]
    %v90 = vld [vmem:[%s60 + $0x1c] sm:$0xf]
    %v91 = vld [vmem:[%s60 + $0x20] sm:$0xf]
    %v92 = vld [vmem:[%s60 + $0x24] sm:$0xf]
    %v93 = vld [vmem:[%s60 + $0x28] sm:$0xf]
    %v94 = vld [vmem:[%s60 + $0x2c] sm:$0xf]
    %v95 = vld [vmem:[%s60 + $0x30] sm:$0xf]
    %v96 = vld [vmem:[%s60 + $0x34] sm:$0xf]
    %v97 = vld [vmem:[%s60 + $0x38] sm:$0xf]
    %v98 = vld [vmem:[%s60 + $0x3c] sm:$0xf]
    %v99 = vunpack.c.l.bf16 %v83
    %v100 = vunpack.c.l.bf16 %v84
    %v101 = vunpack.c.l.bf16 %v85
    %v102 = vunpack.c.l.bf16 %v86
    %v103 = vunpack.c.l.bf16 %v87
    %v104 = vunpack.c.l.bf16 %v88
    %v105 = vunpack.c.l.bf16 %v89
    %v106 = vunpack.c.l.bf16 %v90
    %v107 = vunpack.c.l.bf16 %v91
    %v108 = vunpack.c.l.bf16 %v92
    %v109 = vunpack.c.l.bf16 %v93
    %v110 = vunpack.c.l.bf16 %v94
    %v111 = vunpack.c.l.bf16 %v95
    %v112 = vunpack.c.l.bf16 %v96
    %v113 = vunpack.c.l.bf16 %v97
    %v114 = vunpack.c.l.bf16 %v98
    %v115 = vld [vmem:[%s68] sm:$0xf]
    %v116 = vld [vmem:[%s68 + $0x4] sm:$0xf]
    %v117 = vld [vmem:[%s68 + $0x8] sm:$0xf]
    %v118 = vld [vmem:[%s68 + $0xc] sm:$0xf]
    %v119 = vld [vmem:[%s68 + $0x10] sm:$0xf]
    %v120 = vld [vmem:[%s68 + $0x14] sm:$0xf]
    %v121 = vld [vmem:[%s68 + $0x18] sm:$0xf]
    %v122 = vld [vmem:[%s68 + $0x1c] sm:$0xf]
    %v123 = vld [vmem:[%s68 + $0x20] sm:$0xf]
    %v124 = vld [vmem:[%s68 + $0x24] sm:$0xf]
    %v125 = vld [vmem:[%s68 + $0x28] sm:$0xf]
    %v126 = vld [vmem:[%s68 + $0x2c] sm:$0xf]
    %v127 = vld [vmem:[%s68 + $0x30] sm:$0xf]
    %v128 = vld [vmem:[%s68 + $0x34] sm:$0xf]
    %v129 = vld [vmem:[%s68 + $0x38] sm:$0xf]
    %v130 = vld [vmem:[%s68 + $0x3c] sm:$0xf]
    %v131 = vunpack.c.l.bf16 %v115
    %v132 = vunpack.c.l.bf16 %v116
    %v133 = vunpack.c.l.bf16 %v117
    %v134 = vunpack.c.l.bf16 %v118
    %v135 = vunpack.c.l.bf16 %v119
    %v136 = vunpack.c.l.bf16 %v120
    %v137 = vunpack.c.l.bf16 %v121
    %v138 = vunpack.c.l.bf16 %v122
    %v139 = vunpack.c.l.bf16 %v123
    %v140 = vunpack.c.l.bf16 %v124
    %v141 = vunpack.c.l.bf16 %v125
    %v142 = vunpack.c.l.bf16 %v126
    %v143 = vunpack.c.l.bf16 %v127
    %v144 = vunpack.c.l.bf16 %v128
    %v145 = vunpack.c.l.bf16 %v129
    %v146 = vunpack.c.l.bf16 %v130
    %v147 = vmul.f32 %v99, %v131
    %v148 = vmul.f32 %v100, %v132
    %v149 = vmul.f32 %v101, %v133
    %v150 = vmul.f32 %v102, %v134
    %v151 = vmul.f32 %v103, %v135
    %v152 = vmul.f32 %v104, %v136
    %v153 = vmul.f32 %v105, %v137
    %v154 = vmul.f32 %v106, %v138
    %v155 = vmul.f32 %v107, %v139
    %v156 = vmul.f32 %v108, %v140
    %v157 = vmul.f32 %v109, %v141
    %v158 = vmul.f32 %v110, %v142
    %v159 = vmul.f32 %v111, %v143
    %v160 = vmul.f32 %v112, %v144
    %v161 = vmul.f32 %v113, %v145
    %v162 = vmul.f32 %v114, %v146
    %vm163 = vcmask 261120
    %v165 = vsel %vm163, 1.0, 0
    %v168 = vsel %vm163, %v147, 0
    %v171 = vsel %vm163, %v148, 0
    %v174 = vsel %vm163, %v149, 0
    %v177 = vsel %vm163, %v150, 0
    %v180 = vsel %vm163, %v151, 0
    %v183 = vsel %vm163, %v152, 0
    %v186 = vsel %vm163, %v153, 0
    %v189 = vsel %vm163, %v154, 0
    %v192 = vsel %vm163, %v155, 0
    %v195 = vsel %vm163, %v156, 0
    %v198 = vsel %vm163, %v157, 0
    %v201 = vsel %vm163, %v158, 0
    %v204 = vsel %vm163, %v159, 0
    %v207 = vsel %vm163, %v160, 0
    %v210 = vsel %vm163, %v161, 0
    %v213 = vsel %vm163, %v162, 0
    %215 = vmatprep.subr.mxu0 0.0
    %216 = vmatpush1.xpose.msra.mxu0 %v213
    %217 = vmatprep.subr.mxu0 0.0
    %218 = vmatpush1.xpose.msra.mxu0 %v210
    %219 = vmatprep.subr.mxu0 0.0
    %220 = vmatpush1.xpose.msra.mxu0 %v207
    %221 = vmatprep.subr.mxu0 0.0
    %222 = vmatpush1.xpose.msra.mxu0 %v204
    %223 = vmatprep.subr.mxu0 0.0
    %224 = vmatpush1.xpose.msra.mxu0 %v201
    %225 = vmatprep.subr.mxu0 0.0
    %226 = vmatpush1.xpose.msra.mxu0 %v198
    %227 = vmatprep.subr.mxu0 0.0
    %228 = vmatpush1.xpose.msra.mxu0 %v195
    %229 = vmatprep.subr.mxu0 0.0
    %230 = vmatpush1.xpose.msra.mxu0 %v192
    %231 = vmatprep.subr.mxu0 0.0
    %232 = vmatpush1.xpose.msra.mxu0 %v189
    %233 = vmatprep.subr.mxu0 0.0
    %234 = vmatpush1.xpose.msra.mxu0 %v186
    %235 = vmatprep.subr.mxu0 0.0
    %236 = vmatpush1.xpose.msra.mxu0 %v183
    %237 = vmatprep.subr.mxu0 0.0
    %238 = vmatpush1.xpose.msra.mxu0 %v180
    %239 = vmatprep.subr.mxu0 0.0
    %240 = vmatpush1.xpose.msra.mxu0 %v177
    %241 = vmatprep.subr.mxu0 0.0
    %242 = vmatpush1.xpose.msra.mxu0 %v174
    %243 = vmatprep.subr.mxu0 0.0
    %244 = vmatpush1.xpose.msra.mxu0 %v171
    %245 = vmatprep.subr.mxu0 0.0
    %246 = vmatpush1.xpose.msra.mxu0 %v168
    %247 = vmatprep.subr.mxu0 0.0
    %248 = vmatpush2.xpose.msra.mxu0 0.0
    %249 = vmatprep.subr.mxu0 0.0
    %250 = vmatpush2.xpose.msra.mxu0 0.0
    %251 = vmatprep.subr.mxu0 0.0
    %252 = vmatpush2.xpose.msra.mxu0 0.0
    %253 = vmatprep.subr.mxu0 0.0
    %254 = vmatpush2.xpose.msra.mxu0 0.0
    %255 = vmatprep.subr.mxu0 0.0
    %256 = vmatpush2.xpose.msra.mxu0 0.0
    %257 = vmatprep.subr.mxu0 0.0
    %258 = vmatpush2.xpose.msra.mxu0 0.0
    %259 = vmatprep.subr.mxu0 0.0
    %260 = vmatpush2.xpose.msra.mxu0 0.0
    %261 = vmatprep.subr.mxu0 0.0
    %262 = vmatpush2.xpose.msra.mxu0 0.0
    %263 = vmatprep.subr.mxu0 0.0
    %264 = vmatpush2.xpose.msra.mxu0 0.0
    %265 = vmatprep.subr.mxu0 0.0
    %266 = vmatpush2.xpose.msra.mxu0 0.0
    %267 = vmatprep.subr.mxu0 0.0
    %268 = vmatpush2.xpose.msra.mxu0 0.0
    %269 = vmatprep.subr.mxu0 0.0
    %270 = vmatpush2.xpose.msra.mxu0 0.0
    %271 = vmatprep.subr.mxu0 0.0
    %272 = vmatpush2.xpose.msra.mxu0 0.0
    %273 = vmatprep.subr.mxu0 0.0
    %274 = vmatpush2.xpose.msra.mxu0 0.0
    %275 = vmatprep.subr.mxu0 0.0
    %276 = vmatpush2.xpose.msra.mxu0 0.0
    %277 = vmatprep.subr.mxu0 0.0
    %278 = vmatpush2.xpose.msra.mxu0 0.0
    %279 = vmatprep.mubr.f32.mxu0 0.0
    %280 = vmatmul.mubr.f32.gmra.mxu0 %v165
    %v281 = vpop.f32.mrf.mxu0
    %v282 = vadd.f32 0.0, %v281
    %v283 = vpop.f32.mrf.mxu0
    %284 = vdwg.mxu0
    %v285 = vld [vmem:[%s74] sm:$0x1]
    %v286 = vsub.f32 %v282, %v285
    %v287 = vld [vmem:[#allocation2] sm:$0x1]
    %v288 = vmul.f32 %v286, %v286
    %vm289 = vcmask 1040384
    %v290 = vsel %vm289, %v288, 0.0
    %291 = vadd.xlane.f32.xlu0 %v290
    %v292 = vpop.xlane.xlu0 %291
    %v293 = vrot.slane %v292, 4
    %v294 = vadd.f32 %v292, %v293
    %v295 = vrot.slane %v294, 2
    %v296 = vadd.f32 %v294, %v295
    %v297 = vrot.slane %v296, 1
    %v298 = vadd.f32 %v296, %v297
    %s299 = vtos %v298
    %v300 = vstv %s299
    %v301 = vadd.f32 %v287, %v300
    %vm302 = vcmask 0
    %303 = vst.msk [vmem:[#allocation2] sm:$0x1] %vm302, %v301
    %v304 = vld [vmem:[#allocation4] sm:$0x1]
    %v305 = vmul.f32 %v99, %v99
    %v306 = vmul.f32 %v100, %v100
    %v307 = vmul.f32 %v101, %v101
    %v308 = vmul.f32 %v102, %v102
    %v309 = vmul.f32 %v103, %v103
    %v310 = vmul.f32 %v104, %v104
    %v311 = vmul.f32 %v105, %v105
    %v312 = vmul.f32 %v106, %v106
    %v313 = vmul.f32 %v107, %v107
    %v314 = vmul.f32 %v108, %v108
    %v315 = vmul.f32 %v109, %v109
    %v316 = vmul.f32 %v110, %v110
    %v317 = vmul.f32 %v111, %v111
    %v318 = vmul.f32 %v112, %v112
    %v319 = vmul.f32 %v113, %v113
    %v320 = vmul.f32 %v114, %v114
    %v321 = vsel %vm163, %v305, 0.0
    %v322 = vsel %vm163, %v306, 0.0
    %v323 = vadd.f32 %v321, %v322
    %v324 = vsel %vm163, %v307, 0.0
    %v325 = vadd.f32 %v323, %v324
    %v326 = vsel %vm163, %v308, 0.0
    %v327 = vadd.f32 %v325, %v326
    %v328 = vsel %vm163, %v309, 0.0
    %v329 = vadd.f32 %v327, %v328
    %v330 = vsel %vm163, %v310, 0.0
    %v331 = vadd.f32 %v329, %v330
    %v332 = vsel %vm163, %v311, 0.0
    %v333 = vadd.f32 %v331, %v332
    %v334 = vsel %vm163, %v312, 0.0
    %v335 = vadd.f32 %v333, %v334
    %v336 = vsel %vm163, %v313, 0.0
    %v337 = vadd.f32 %v335, %v336
    %v338 = vsel %vm163, %v314, 0.0
    %v339 = vadd.f32 %v337, %v338
    %v340 = vsel %vm163, %v315, 0.0
    %v341 = vadd.f32 %v339, %v340
    %v342 = vsel %vm163, %v316, 0.0
    %v343 = vadd.f32 %v341, %v342
    %v344 = vsel %vm163, %v317, 0.0
    %v345 = vadd.f32 %v343, %v344
    %v346 = vsel %vm163, %v318, 0.0
    %v347 = vadd.f32 %v345, %v346
    %v348 = vsel %vm163, %v319, 0.0
    %v349 = vadd.f32 %v347, %v348
    %v350 = vsel %vm163, %v320, 0.0
    %v351 = vadd.f32 %v349, %v350
    %352 = vadd.xlane.f32.xlu0 %v351
    %v353 = vpop.xlane.xlu0 %352
    %v354 = vrot.slane %v353, 4
    %v355 = vadd.f32 %v353, %v354
    %v356 = vrot.slane %v355, 2
    %v357 = vadd.f32 %v355, %v356
    %v358 = vrot.slane %v357, 1
    %v359 = vadd.f32 %v357, %v358
    %s360 = vtos %v359
    %v361 = vstv %s360
    %v362 = vmul.f32 %v131, %v131
    %v363 = vmul.f32 %v132, %v132
    %v364 = vmul.f32 %v133, %v133
    %v365 = vmul.f32 %v134, %v134
    %v366 = vmul.f32 %v135, %v135
    %v367 = vmul.f32 %v136, %v136
    %v368 = vmul.f32 %v137, %v137
    %v369 = vmul.f32 %v138, %v138
    %v370 = vmul.f32 %v139, %v139
    %v371 = vmul.f32 %v140, %v140
    %v372 = vmul.f32 %v141, %v141
    %v373 = vmul.f32 %v142, %v142
    %v374 = vmul.f32 %v143, %v143
    %v375 = vmul.f32 %v144, %v144
    %v376 = vmul.f32 %v145, %v145
    %v377 = vmul.f32 %v146, %v146
    %v378 = vsel %vm163, %v362, 0.0
    %v379 = vsel %vm163, %v363, 0.0
    %v380 = vadd.f32 %v378, %v379
    %v381 = vsel %vm163, %v364, 0.0
    %v382 = vadd.f32 %v380, %v381
    %v383 = vsel %vm163, %v365, 0.0
    %v384 = vadd.f32 %v382, %v383
    %v385 = vsel %vm163, %v366, 0.0
    %v386 = vadd.f32 %v384, %v385
    %v387 = vsel %vm163, %v367, 0.0
    %v388 = vadd.f32 %v386, %v387
    %v389 = vsel %vm163, %v368, 0.0
    %v390 = vadd.f32 %v388, %v389
    %v391 = vsel %vm163, %v369, 0.0
    %v392 = vadd.f32 %v390, %v391
    %v393 = vsel %vm163, %v370, 0.0
    %v394 = vadd.f32 %v392, %v393
    %v395 = vsel %vm163, %v371, 0.0
    %v396 = vadd.f32 %v394, %v395
    %v397 = vsel %vm163, %v372, 0.0
    %v398 = vadd.f32 %v396, %v397
    %v399 = vsel %vm163, %v373, 0.0
    %v400 = vadd.f32 %v398, %v399
    %v401 = vsel %vm163, %v374, 0.0
    %v402 = vadd.f32 %v400, %v401
    %v403 = vsel %vm163, %v375, 0.0
    %v404 = vadd.f32 %v402, %v403
    %v405 = vsel %vm163, %v376, 0.0
    %v406 = vadd.f32 %v404, %v405
    %v407 = vsel %vm163, %v377, 0.0
    %v408 = vadd.f32 %v406, %v407
    %409 = vadd.xlane.f32.xlu0 %v408
    %v410 = vpop.xlane.xlu0 %409
    %v411 = vrot.slane %v410, 4
    %v412 = vadd.f32 %v410, %v411
    %v413 = vrot.slane %v412, 2
    %v414 = vadd.f32 %v412, %v413
    %v415 = vrot.slane %v414, 1
    %v416 = vadd.f32 %v414, %v415
    %s417 = vtos %v416
    %v418 = vstv %s417
    %v419 = vadd.f32 %v361, %v418
    %v420 = vadd.f32 %v304, %v419
    %421 = vst.msk [vmem:[#allocation4] sm:$0x1] %vm302, %v420
    // Predicated region
    $region18: #{tpu_custom_call.1} parent=1 // pred_check
      _
    $region19: #{tpu_custom_call.1} parent=1 // pred_check_branch
      %423 = sbr.rel (0) target = $region21
    $region20: #{tpu_custom_call.1} parent=1 // pred_region
      %s425 = ssub.s32 16, 16
      %426 = vsyncadd [#allocation3], %s425
      %s428 = sshll.u32 [#allocation2], 4
      %s429 = int_to_ptr.vmem [resolvable:$true] %s428
      %431 = dma.vmem_to_hbm [thread:$0]  %s429, 16, %s3, [#allocation3]
    $region21: #{tpu_custom_call.1} parent=1 // pred_fallthru
      _
    // Predicated region
    $region22: #{tpu_custom_call.1} parent=1 // pred_check
      _
    $region23: #{tpu_custom_call.1} parent=1 // pred_check_branch
      %433 = sbr.rel (0) target = $region25
    $region24: #{tpu_custom_call.1} parent=1 // pred_region
      %s435 = ssub.s32 16, 16
      %436 = vsyncadd [#allocation5], %s435
      %s438 = sshll.u32 [#allocation4], 4
      %s439 = int_to_ptr.vmem [resolvable:$true] %s438
      %441 = dma.vmem_to_hbm [thread:$0]  %s439, 16, %s4, [#allocation5]
    $region25: #{tpu_custom_call.1} parent=1 // pred_fallthru
      _
    // Predicated region
    $region26: #{tpu_custom_call.1} parent=1 // pred_check
      _
    $region27: #{tpu_custom_call.1} parent=1 // pred_check_branch
      %443 = sbr.rel (0) target = $region29
    $region28: #{tpu_custom_call.1} parent=1 // pred_region
      %444 = dma.done [#allocation3], 16
    $region29: #{tpu_custom_call.1} parent=1 // pred_fallthru
      _
    // Predicated region
    $region30: #{tpu_custom_call.1} parent=1 // pred_check
      _
    $region31: #{tpu_custom_call.1} parent=1 // pred_check_branch
      %446 = sbr.rel (0) target = $region33
    $region32: #{tpu_custom_call.1} parent=1 // pred_region
      %447 = dma.done [#allocation5], 16
    $region33: #{tpu_custom_call.1} parent=1 // pred_fallthru
      _
    %448 = vsyncpa [#allocation3], 1
    %449 = vsyncpa [#allocation5], 1

</llo_original>
